<compile_context>
chip_gen: v6e
topology: v6e:2x2x1
jax: 0.10.0
libtpu: 0.0.40
codegen_flags: <defaults>
</compile_context>

<pallas_src>
import functools

import numpy as np
import jax
import jax.numpy as jnp
from jax import lax
from jax.experimental import pallas as pl
from jax.experimental.pallas import tpu as pltpu

LANE = 128
SUBLANE = 8


def _round_up(n, m):
    return ((n + m - 1) // m) * m


def _vmem_capacity_bytes():
    """Per-core VMEM capacity; conservative fallback (v7x) if the query fails."""
    try:
        cap = int(pltpu.get_tpu_info().vmem_capacity_bytes)
        if cap > 0:
            return cap
    except Exception:
        pass
    return 64 * 1024 * 1024


def _choose_dchunk(d):
    """Feature-axis chunk for the in-kernel two-pass sweep."""
    if d <= 1024:
        return d
    for c in (1024, 512, 256, 128):
        if d % c == 0:
            return c
    return 512  # remainder chunk handled explicitly


def _choose_batch_tile(batch, d, k_pad, in_bytes, dc, vmem_budget):
    """Largest batch tile whose resident working set fits the VMEM budget."""
    # Grid-invariant W (bf16), double-buffered by the pipeline.
    fixed = 2 * d * k_pad * 2
    per_row = (4 * d * in_bytes          # grad + x input blocks, double-buffered
               + 2 * k_pad * 4           # outputs input block, double-buffered
               + k_pad * 4               # f32 matmul accumulator scratch
               + 2 * LANE * 4            # gmin/gmax scratch (lane-padded)
               + 4 * dc * 4 + dc * 2)    # per-chunk f32 temps + bf16 staging
    avail = max(vmem_budget - fixed, 0)
    tb = avail // max(per_row, 1)
    # v7x: let the "parallel" batch axis span both TensorCores when possible.
    if batch > SUBLANE:
        tb = min(tb, _round_up((batch + 1) // 2, SUBLANE))
    tb = min(tb, _round_up(batch, SUBLANE))
    tb = max(SUBLANE, (tb // SUBLANE) * SUBLANE)
    return int(tb)


def _fid_kernel(outputs_ref, grad_ref, x_ref, w_ref, part_ref,
                gmin_sc, gmax_sc, acc_sc, *, batch, tb, d, dc):
    """One batch tile: partial dist-sum for rows [i*tb, (i+1)*tb)."""
    nfull = d // dc
    rem = d - nfull * dc

    # ---- Pass 1: per-row min / max of grad over the feature axis ----------
    gmin_sc[...] = jnp.full(gmin_sc.shape, jnp.inf, jnp.float32)
    gmax_sc[...] = jnp.full(gmax_sc.shape, -jnp.inf, jnp.float32)

    def _minmax(off, size):
        g = grad_ref[:, pl.ds(off, size)].astype(jnp.float32)
        gmin_sc[...] = jnp.minimum(gmin_sc[...], jnp.min(g, axis=-1, keepdims=True))
        gmax_sc[...] = jnp.maximum(gmax_sc[...], jnp.max(g, axis=-1, keepdims=True))

    if nfull <= 8:
        for c in range(nfull):
            _minmax(c * dc, dc)
    else:
        @pl.loop(0, nfull)
        def _(c):
            _minmax(pl.multiple_of(c * dc, dc), dc)
    if rem:
        _minmax(nfull * dc, rem)

    gmin = gmin_sc[...]                                        # [TB, 1]
    # Exact divide (kernel is HBM-bound; precision matters on the matmul path).
    inv = jnp.float32(1.0) / (gmax_sc[...] - gmin)             # [TB, 1]

    # ---- Pass 2: ngrad / x_masked / linear model, chunked over D ----------
    acc_sc[...] = jnp.zeros(acc_sc.shape, jnp.float32)

    def _accum(off, size):
        g = grad_ref[:, pl.ds(off, size)].astype(jnp.float32)
        xv = x_ref[:, pl.ds(off, size)].astype(jnp.float32)
        ngrad = (g - gmin) * inv
        xm = xv * (1.0 - ngrad)
        acc_sc[...] += jnp.dot(xm.astype(jnp.bfloat16),
                               w_ref[pl.ds(off, size), :],
                               preferred_element_type=jnp.float32)

    if nfull <= 8:
        for c in range(nfull):
            _accum(c * dc, dc)
    else:
        @pl.loop(0, nfull)
        def _(c):
            _accum(pl.multiple_of(c * dc, dc), dc)
    if rem:
        _accum(nfull * dc, rem)

    # ---- |cosine_similarity(outputs, out0, dim=-1)| ------------------------
    out0 = acc_sc[...]                                         # [TB, K_pad]
    a = outputs_ref[...].astype(jnp.float32)                   # [TB, K_pad]
    eps = jnp.float32(1e-8)
    dotp = jnp.sum(a * out0, axis=-1, keepdims=True)
    na = jnp.maximum(jnp.sqrt(jnp.sum(a * a, axis=-1, keepdims=True)), eps)
    nb = jnp.maximum(jnp.sqrt(jnp.sum(out0 * out0, axis=-1, keepdims=True)), eps)
    dist = jnp.abs(dotp / (na * nb))                           # [TB, 1]

    # Mask padded / out-of-range batch rows BEFORE the reduction.
    row = pl.program_id(0) * tb + lax.broadcasted_iota(jnp.int32, (tb, 1), 0)
    dist = jnp.where(row < batch, dist, 0.0)

    # Lane-dense (1, 8, 128) broadcast partial-sum writeback (unmasked vst).
    partial = jnp.sum(dist)
    part_ref[...] = jnp.broadcast_to(partial, part_ref.shape).astype(jnp.float32)


@functools.partial(jax.jit, static_argnames=("thr",))
def fid_loss(outputs, grad, x, w, y, thr=0.1):
    """Pallas implementation of Fid.forward (model = linear layer W)."""
    B = x.shape[0]
    D = int(np.prod(x.shape[1:]))
    K = w.shape[1]
    K_pad = _round_up(K, LANE)

    # Flatten NCHW -> [B, D]; layout-preserving (no HBM copy), native dtype.
    grad2 = grad.reshape(B, D)
    x2 = x.reshape(B, D)
    outputs2 = outputs

    # Only tiny-batch row padding (avoids block > array); no full grad/x copy.
    B_rows = max(B, SUBLANE)
    if B_rows != B:
        grad2 = jnp.pad(grad2, ((0, B_rows - B), (0, 0)))
        x2 = jnp.pad(x2, ((0, B_rows - B), (0, 0)))
    if B_rows != B or K_pad != K:
        outputs2 = jnp.pad(outputs2, ((0, B_rows - B), (0, K_pad - K)))

    # Parameter prep (tiny, D x K): lane-dense K pad, bf16 MXU operand.
    w_p = jnp.pad(w, ((0, 0), (0, K_pad - K))).astype(jnp.bfloat16)

    in_bytes = max(jnp.dtype(grad2.dtype).itemsize, jnp.dtype(x2.dtype).itemsize)
    DC = _choose_dchunk(D)
    vmem_cap = _vmem_capacity_bytes()
    vmem_budget = int(vmem_cap * 0.38)
    TB = _choose_batch_tile(B_rows, D, K_pad, in_bytes, DC, vmem_budget)
    num_tiles = int(pl.cdiv(B_rows, TB))

    kernel = functools.partial(_fid_kernel, batch=int(B), tb=int(TB),
                               d=int(D), dc=int(DC))
    partials = pl.pallas_call(
        kernel,
        grid=(num_tiles,),
        in_specs=[
            pl.BlockSpec((TB, K_pad), lambda i: (i, 0)),       # outputs
            pl.BlockSpec((TB, D), lambda i: (i, 0)),           # grad
            pl.BlockSpec((TB, D), lambda i: (i, 0)),           # x
            pl.BlockSpec((D, K_pad), lambda i: (0, 0)),        # W (grid-invariant)
        ],
        out_specs=pl.BlockSpec((1, SUBLANE, LANE), lambda i: (i, 0, 0)),
        out_shape=jax.ShapeDtypeStruct((num_tiles, SUBLANE, LANE), jnp.float32),
        scratch_shapes=[
            pltpu.VMEM((TB, 1), jnp.float32),                  # row min
            pltpu.VMEM((TB, 1), jnp.float32),                  # row max
            pltpu.VMEM((TB, K_pad), jnp.float32),              # matmul accumulator
        ],
        compiler_params=pltpu.CompilerParams(
            dimension_semantics=("parallel",),
            vmem_limit_bytes=int(vmem_cap * 0.5),
        ),
    )(outputs2, grad2, x2, w_p)

    dist_sum = jnp.sum(partials[:, 0, 0])
    return jnp.maximum(dist_sum / jnp.float32(y.shape[0]) - jnp.float32(thr), 0.0)


def _fid_loss_ref(outputs, grad, x, w, y, thr=0.1):
    """Pure-JAX fp32 reference mirroring the PyTorch semantics."""
    B = x.shape[0]
    g = grad.reshape(B, 1, -1)
    gmax = g.max(axis=2).reshape(B, 1, 1, 1)
    gmin = g.min(axis=2).reshape(B, 1, 1, 1)
    ngrad = (grad - gmin) / (gmax - gmin)
    x_masked = x * (1.0 - ngrad)
    out0 = x_masked.reshape(B, -1) @ w
    eps = 1e-8
    na = jnp.maximum(jnp.linalg.norm(outputs, axis=-1), eps)
    nb = jnp.maximum(jnp.linalg.norm(out0, axis=-1), eps)
    cos = jnp.sum(outputs * out0, axis=-1) / (na * nb)
    return jnp.maximum(0.0, jnp.abs(cos).sum() / y.shape[0] - thr)


if __name__ == "__main__":
    B, C, H, W_ = 2, 4, 16, 16
    D = C * H * W_
    K = 16

    key = jax.random.PRNGKey(0)
    kx, kg, kw = jax.random.split(key, 3)
    x = jax.random.normal(kx, (B, C, H, W_), dtype=jnp.float32)
    grad = jax.random.normal(kg, (B, C, H, W_), dtype=jnp.float32)
    # Deterministic synthetic "model" parameters (model(z) = flatten(z) @ w).
    w = jax.random.normal(kw, (D, K), dtype=jnp.float32) * 0.02
    y = jnp.zeros((B,), dtype=jnp.int32)

    # `outputs` is an input to forward() in PyTorch; here it is model(x).
    outputs = x.reshape(B, -1) @ w

    loss = fid_loss(outputs, grad, x, w, y, thr=0.1)
    jax.block_until_ready(loss)

    ref = _fid_loss_ref(outputs, grad, x, w, y, thr=0.1)
    # Tolerance covers the bf16 MXU feed (f32 accumulate, exact reciprocal).
    np.testing.assert_allclose(np.asarray(loss), np.asarray(ref),
                               rtol=2e-2, atol=2e-2)
    print("KERNEL_OK")
</pallas_src>

<mosaic_0001>
module attributes {stable_mosaic.version = 11 : i64} {
  func.func @_fid_kernel(%arg0: i32, %arg1: memref<8x128xf32, #tpu.memory_space<vmem>>, %arg2: memref<8x1024xf32, #tpu.memory_space<vmem>>, %arg3: memref<8x1024xf32, #tpu.memory_space<vmem>>, %arg4: memref<1024x128xbf16, #tpu.memory_space<vmem>>, %arg5: memref<1x8x128xf32, #tpu.memory_space<vmem>>, %arg6: memref<8x1xf32, #tpu.memory_space<vmem>>, %arg7: memref<8x1xf32, #tpu.memory_space<vmem>>, %arg8: memref<8x128xf32, #tpu.memory_space<vmem>>) attributes {dimension_semantics = [#tpu.dimension_semantics<parallel>], iteration_bounds = array<i64: 1>, scalar_prefetch = 0 : i64, scratch_operands = 3 : i64, tpu.core_type = #tpu.core_type<tc>, window_params = [{transform_indices = @transform_0, window_bounds = array<i64: 8, 128>}, {transform_indices = @transform_1, window_bounds = array<i64: 8, 1024>}, {transform_indices = @transform_2, window_bounds = array<i64: 8, 1024>}, {pipeline_mode = #tpu.pipeline_mode<synchronous>, transform_indices = @transform_3, window_bounds = array<i64: 1024, 128>}, {transform_indices = @transform_4, window_bounds = array<i64: 1, 8, 128>}]} {
    %cst = arith.constant 0x7F800000 : f32
    %0 = vector.broadcast %cst : f32 to vector<8x1xf32>
    %c0 = arith.constant 0 : index
    %c0_0 = arith.constant 0 : index
    %1 = vector.load %arg6[%c0, %c0_0] : memref<8x1xf32, #tpu.memory_space<vmem>>, vector<8x1xf32>
    tpu.vector_store %arg6[%c0, %c0_0], %0 {strides = array<i32>} : memref<8x1xf32, #tpu.memory_space<vmem>>, vector<8x1xf32>,
    %cst_1 = arith.constant 0xFF800000 : f32
    %2 = vector.broadcast %cst_1 : f32 to vector<8x1xf32>
    %c0_2 = arith.constant 0 : index
    %c0_3 = arith.constant 0 : index
    %3 = vector.load %arg7[%c0_2, %c0_3] : memref<8x1xf32, #tpu.memory_space<vmem>>, vector<8x1xf32>
    tpu.vector_store %arg7[%c0_2, %c0_3], %2 {strides = array<i32>} : memref<8x1xf32, #tpu.memory_space<vmem>>, vector<8x1xf32>,
    %c0_4 = arith.constant 0 : index
    %c0_5 = arith.constant 0 : index
    %4 = vector.load %arg2[%c0_4, %c0_5] : memref<8x1024xf32, #tpu.memory_space<vmem>>, vector<8x1024xf32>
    %c0_6 = arith.constant 0 : index
    %c0_7 = arith.constant 0 : index
    %5 = vector.load %arg6[%c0_6, %c0_7] : memref<8x1xf32, #tpu.memory_space<vmem>>, vector<8x1xf32>
    %cst_8 = arith.constant dense<0x7F800000> : vector<8xf32>
    %6 = vector.multi_reduction <minimumf>, %4, %cst_8 [1] : vector<8x1024xf32> to vector<8xf32>
    %7 = vector.shape_cast %6 : vector<8xf32> to vector<8x1xf32>
    %8 = arith.minimumf %5, %7 : vector<8x1xf32>
    %c0_9 = arith.constant 0 : index
    %c0_10 = arith.constant 0 : index
    %9 = vector.load %arg6[%c0_9, %c0_10] : memref<8x1xf32, #tpu.memory_space<vmem>>, vector<8x1xf32>
    tpu.vector_store %arg6[%c0_9, %c0_10], %8 {strides = array<i32>} : memref<8x1xf32, #tpu.memory_space<vmem>>, vector<8x1xf32>,
    %c0_11 = arith.constant 0 : index
    %c0_12 = arith.constant 0 : index
    %10 = vector.load %arg7[%c0_11, %c0_12] : memref<8x1xf32, #tpu.memory_space<vmem>>, vector<8x1xf32>
    %cst_13 = arith.constant dense<0xFF800000> : vector<8xf32>
    %11 = vector.multi_reduction <maximumf>, %4, %cst_13 [1] : vector<8x1024xf32> to vector<8xf32>
    %12 = vector.shape_cast %11 : vector<8xf32> to vector<8x1xf32>
    %13 = arith.maximumf %10, %12 : vector<8x1xf32>
    %c0_14 = arith.constant 0 : index
    %c0_15 = arith.constant 0 : index
    %14 = vector.load %arg7[%c0_14, %c0_15] : memref<8x1xf32, #tpu.memory_space<vmem>>, vector<8x1xf32>
    tpu.vector_store %arg7[%c0_14, %c0_15], %13 {strides = array<i32>} : memref<8x1xf32, #tpu.memory_space<vmem>>, vector<8x1xf32>,
    %c0_16 = arith.constant 0 : index
    %c0_17 = arith.constant 0 : index
    %15 = vector.load %arg6[%c0_16, %c0_17] : memref<8x1xf32, #tpu.memory_space<vmem>>, vector<8x1xf32>
    %c0_18 = arith.constant 0 : index
    %c0_19 = arith.constant 0 : index
    %16 = vector.load %arg7[%c0_18, %c0_19] : memref<8x1xf32, #tpu.memory_space<vmem>>, vector<8x1xf32>
    %17 = arith.subf %16, %15 : vector<8x1xf32>
    %cst_20 = arith.constant 1.000000e+00 : f32
    %18 = vector.broadcast %cst_20 : f32 to vector<8x1xf32>
    %19 = arith.divf %18, %17 : vector<8x1xf32>
    %cst_21 = arith.constant 0.000000e+00 : f32
    %20 = vector.broadcast %cst_21 : f32 to vector<8x128xf32>
    %c0_22 = arith.constant 0 : index
    %c0_23 = arith.constant 0 : index
    %21 = vector.load %arg8[%c0_22, %c0_23] : memref<8x128xf32, #tpu.memory_space<vmem>>, vector<8x128xf32>
    tpu.vector_store %arg8[%c0_22, %c0_23], %20 {strides = array<i32>} : memref<8x128xf32, #tpu.memory_space<vmem>>, vector<8x128xf32>,
    %c0_24 = arith.constant 0 : index
    %c0_25 = arith.constant 0 : index
    %22 = vector.load %arg2[%c0_24, %c0_25] : memref<8x1024xf32, #tpu.memory_space<vmem>>, vector<8x1024xf32>
    %c0_26 = arith.constant 0 : index
    %c0_27 = arith.constant 0 : index
    %23 = vector.load %arg3[%c0_26, %c0_27] : memref<8x1024xf32, #tpu.memory_space<vmem>>, vector<8x1024xf32>
    %24 = vector.broadcast %15 : vector<8x1xf32> to vector<8x1024xf32>
    %25 = arith.subf %22, %24 : vector<8x1024xf32>
    %26 = vector.broadcast %19 : vector<8x1xf32> to vector<8x1024xf32>
    %27 = arith.mulf %25, %26 : vector<8x1024xf32>
    %cst_28 = arith.constant 1.000000e+00 : f32
    %28 = vector.broadcast %cst_28 : f32 to vector<8x1024xf32>
    %29 = arith.subf %28, %27 : vector<8x1024xf32>
    %30 = arith.mulf %23, %29 : vector<8x1024xf32>
    %c0_29 = arith.constant 0 : index
    %c0_30 = arith.constant 0 : index
    %31 = vector.load %arg8[%c0_29, %c0_30] : memref<8x128xf32, #tpu.memory_space<vmem>>, vector<8x128xf32>
    %32 = arith.truncf %30 : vector<8x1024xf32> to vector<8x1024xbf16>
    %c0_31 = arith.constant 0 : index
    %c0_32 = arith.constant 0 : index
    %33 = vector.load %arg4[%c0_31, %c0_32] : memref<1024x128xbf16, #tpu.memory_space<vmem>>, vector<1024x128xbf16>
    %cst_33 = arith.constant dense<0.000000e+00> : vector<8x128xf32>
    %34 = tpu.matmul %32, %33, %cst_33 {dimension_numbers = #tpu.dot_dimension_numbers<[1], [0], [0], [1], [0, 0, 1, 1], [], []>} : vector<8x1024xbf16>, vector<1024x128xbf16>, vector<8x128xf32> -> vector<8x128xf32>
    %35 = arith.addf %31, %34 : vector<8x128xf32>
    %c0_34 = arith.constant 0 : index
    %c0_35 = arith.constant 0 : index
    %36 = vector.load %arg8[%c0_34, %c0_35] : memref<8x128xf32, #tpu.memory_space<vmem>>, vector<8x128xf32>
    tpu.vector_store %arg8[%c0_34, %c0_35], %35 {strides = array<i32>} : memref<8x128xf32, #tpu.memory_space<vmem>>, vector<8x128xf32>,
    %c0_36 = arith.constant 0 : index
    %c0_37 = arith.constant 0 : index
    %37 = vector.load %arg8[%c0_36, %c0_37] : memref<8x128xf32, #tpu.memory_space<vmem>>, vector<8x128xf32>
    %c0_38 = arith.constant 0 : index
    %c0_39 = arith.constant 0 : index
    %38 = vector.load %arg1[%c0_38, %c0_39] : memref<8x128xf32, #tpu.memory_space<vmem>>, vector<8x128xf32>
    %39 = arith.mulf %38, %37 : vector<8x128xf32>
    %cst_40 = arith.constant dense<0.000000e+00> : vector<8xf32>
    %40 = vector.multi_reduction <add>, %39, %cst_40 [1] : vector<8x128xf32> to vector<8xf32>
    %41 = vector.shape_cast %40 : vector<8xf32> to vector<8x1xf32>
    %42 = arith.mulf %38, %38 : vector<8x128xf32>
    %cst_41 = arith.constant dense<0.000000e+00> : vector<8xf32>
    %43 = vector.multi_reduction <add>, %42, %cst_41 [1] : vector<8x128xf32> to vector<8xf32>
    %44 = vector.shape_cast %43 : vector<8xf32> to vector<8x1xf32>
    %45 = math.sqrt %44 : vector<8x1xf32>
    %cst_42 = arith.constant 9.99999993E-9 : f32
    %46 = vector.broadcast %cst_42 : f32 to vector<8x1xf32>
    %47 = arith.maximumf %45, %46 : vector<8x1xf32>
    %48 = arith.mulf %37, %37 : vector<8x128xf32>
    %cst_43 = arith.constant dense<0.000000e+00> : vector<8xf32>
    %49 = vector.multi_reduction <add>, %48, %cst_43 [1] : vector<8x128xf32> to vector<8xf32>
    %50 = vector.shape_cast %49 : vector<8xf32> to vector<8x1xf32>
    %51 = math.sqrt %50 : vector<8x1xf32>
    %cst_44 = arith.constant 9.99999993E-9 : f32
    %52 = vector.broadcast %cst_44 : f32 to vector<8x1xf32>
    %53 = arith.maximumf %51, %52 : vector<8x1xf32>
    %54 = arith.mulf %47, %53 : vector<8x1xf32>
    %55 = arith.divf %41, %54 : vector<8x1xf32>
    %56 = math.absf %55 : vector<8x1xf32>
    %c8_i32 = arith.constant 8 : i32
    %57 = arith.muli %arg0, %c8_i32 : i32
    %58 = tpu.iota {dimensions = array<i32: 0>} : vector<8x1xi32>
    %59 = vector.broadcast %57 : i32 to vector<8x1xi32>
    %60 = arith.addi %59, %58 : vector<8x1xi32>
    %c2_i32 = arith.constant 2 : i32
    %61 = vector.broadcast %c2_i32 : i32 to vector<8x1xi32>
    %62 = arith.cmpi slt, %60, %61 : vector<8x1xi32>
    %cst_45 = arith.constant 0.000000e+00 : f32
    %63 = vector.broadcast %cst_45 : f32 to vector<8x1xf32>
    %64 = arith.select %62, %56, %63 : vector<8x1xi1>, vector<8x1xf32>
    %65 = vector.shape_cast %64 : vector<8x1xf32> to vector<1x8x1xf32>
    %cst_46 = arith.constant dense<0.000000e+00> : vector<1xf32>
    %66 = vector.multi_reduction <add>, %65, %cst_46 [1, 2] : vector<1x8x1xf32> to vector<1xf32>
    %67 = vector.shape_cast %66 : vector<1xf32> to vector<1x1x1xf32>
    %68 = vector.extract %67[0, 0, 0] : f32 from vector<1x1x1xf32>
    %69 = vector.broadcast %68 : f32 to vector<1x8x128xf32>
    %c0_47 = arith.constant 0 : index
    %c0_48 = arith.constant 0 : index
    %c0_49 = arith.constant 0 : index
    %70 = vector.load %arg5[%c0_47, %c0_48, %c0_49] : memref<1x8x128xf32, #tpu.memory_space<vmem>>, vector<1x8x128xf32>
    tpu.vector_store %arg5[%c0_47, %c0_48, %c0_49], %69 {strides = array<i32>} : memref<1x8x128xf32, #tpu.memory_space<vmem>>, vector<1x8x128xf32>,
    return
  }
  func.func @transform_0(%arg0: i32) -> (i32, i32) {
    %c0_i32 = arith.constant 0 : i32
    %c0_i32_0 = arith.constant 0 : i32
    return %arg0, %c0_i32 : i32, i32
  }
  func.func @transform_1(%arg0: i32) -> (i32, i32) {
    %c0_i32 = arith.constant 0 : i32
    %c0_i32_0 = arith.constant 0 : i32
    return %arg0, %c0_i32 : i32, i32
  }
  func.func @transform_2(%arg0: i32) -> (i32, i32) {
    %c0_i32 = arith.constant 0 : i32
    %c0_i32_0 = arith.constant 0 : i32
    return %arg0, %c0_i32 : i32, i32
  }
  func.func @transform_3(%arg0: i32) -> (i32, i32) {
    %c0_i32 = arith.constant 0 : i32
    %c0_i32_0 = arith.constant 0 : i32
    %c0_i32_1 = arith.constant 0 : i32
    return %c0_i32, %c0_i32_0 : i32, i32
  }
  func.func @transform_4(%arg0: i32) -> (i32, i32, i32) {
    %c0_i32 = arith.constant 0 : i32
    %c0_i32_0 = arith.constant 0 : i32
    %c0_i32_1 = arith.constant 0 : i32
    return %arg0, %c0_i32, %c0_i32_0 : i32, i32, i32
  }
}

</mosaic_0001>

<llo_original>
// kernel: fid_loss.1
$region0: #{fid_loss.1}
  #allocation0 [shape = 'u32[]', space=smem, size = 0x4, offset = 0x4, fixed_abs, tag = 'smem constant byte address 0x4 - core index']
  #allocation1 [shape = 'u32[144,128]{1,0:T(1,128)}', space=vmem, size = 0x12000, scoped, tag = 'internal scratch']
  #allocation2 [shape = 'f32[8,1]{1,0:T(8,128)}', space=vmem, size = 0x1000, scoped, tag = 'scratch operand']
  #allocation3 [shape = 'f32[8,1]{1,0:T(8,128)}', space=vmem, size = 0x1000, scoped, tag = 'scratch operand']
  #allocation4 [shape = 'f32[8,128]{1,0:T(8,128)}', space=vmem, size = 0x1000, scoped, tag = 'scratch operand']
  %s0 = inlined_call_operand.vmem [shape: f32[8,128], index: 0, kind: input, shape index: {}]
  %s1 = inlined_call_operand.vmem [shape: f32[8,1024], index: 1, kind: input, shape index: {}]
  %s2 = inlined_call_operand.vmem [shape: f32[8,1024], index: 2, kind: input, shape index: {}]
  %s3 = inlined_call_operand.vmem [shape: bf16[1024,128], index: 3, kind: input, shape index: {}]
  %s4 = inlined_call_operand.vmem [shape: f32[1,8,128], index: 4, kind: output, shape index: {}]
  %s5 = sld [smem:[#allocation0]]
  $region26: #{fid_loss.1} parent=0
    _
  %s7 = ssub.s32 1, %s5
  %s8 = scalar_select 0, %s7, %s5
  // Predicated region
  $region2: #{fid_loss.1} parent=0 // pred_check
    _
  $region3: #{fid_loss.1} parent=0 // pred_check_branch
    %10 = sbr.rel (0) target = $region5
  $region4: #{fid_loss.1} parent=0 // pred_region
    _
  $region5: #{fid_loss.1} parent=0 // pred_fallthru
    _
  // Predicated region
  $region6: #{fid_loss.1} parent=0 // pred_check
    _
  $region7: #{fid_loss.1} parent=0 // pred_check_branch
    %12 = sbr.rel (0) target = $region9
  $region8: #{fid_loss.1} parent=0 // pred_region
    _
  $region9: #{fid_loss.1} parent=0 // pred_fallthru
    _
  // Predicated region
  $region10: #{fid_loss.1} parent=0 // pred_check
    _
  $region11: #{fid_loss.1} parent=0 // pred_check_branch
    %14 = sbr.rel (0) target = $region13
  $region12: #{fid_loss.1} parent=0 // pred_region
    _
  $region13: #{fid_loss.1} parent=0 // pred_fallthru
    _
  // Predicated region
  $region14: #{fid_loss.1} parent=0 // pred_check
    _
  $region15: #{fid_loss.1} parent=0 // pred_check_branch
    %16 = sbr.rel (0) target = $region17
  $region16: #{fid_loss.1} parent=0 // pred_region
    _
  $region17: #{fid_loss.1} parent=0 // pred_fallthru
    _
  %vm18 = vcmask 7168
  %19 = vst.msk [vmem:[#allocation2] sm:$0xff] %vm18, inf
  %20 = vst.msk [vmem:[#allocation3] sm:$0xff] %vm18, -inf
  %v21 = vld [vmem:[%s1] sm:$0xff]
  %v22 = vld [vmem:[%s1 + $0x8] sm:$0xff]
  %v23 = vld [vmem:[%s1 + $0x10] sm:$0xff]
  %v24 = vld [vmem:[%s1 + $0x18] sm:$0xff]
  %v25 = vld [vmem:[%s1 + $0x20] sm:$0xff]
  %v26 = vld [vmem:[%s1 + $0x28] sm:$0xff]
  %v27 = vld [vmem:[%s1 + $0x30] sm:$0xff]
  %v28 = vld [vmem:[%s1 + $0x38] sm:$0xff]
  %v29 = vld [vmem:[#allocation2] sm:$0xff]
  %v30 = vmin.f32 %v21, %v25
  %v31 = vmin.f32 %v22, %v26
  %v32 = vmin.f32 %v23, %v27
  %v33 = vmin.f32 %v24, %v28
  %v34 = vmin.f32 %v30, %v31
  %v35 = vmin.f32 %v32, %v33
  %v36 = vmin.f32 %v34, %v35
  %37 = vmin.xlane.f32.xlu0 %v36
  %v38 = vpop.xlane.xlu0 %37
  %v39 = vmin.f32 %v29, %v38
  %40 = vst.msk [vmem:[#allocation2] sm:$0xff] %vm18, %v39
  %v41 = vld [vmem:[#allocation3] sm:$0xff]
  %v42 = vmax.f32 %v21, %v25
  %v43 = vmax.f32 %v22, %v26
  %v44 = vmax.f32 %v23, %v27
  %v45 = vmax.f32 %v24, %v28
  %v46 = vmax.f32 %v42, %v43
  %v47 = vmax.f32 %v44, %v45
  %v48 = vmax.f32 %v46, %v47
  %49 = vmax.xlane.f32.xlu0 %v48
  %v50 = vpop.xlane.xlu0 %49
  %v51 = vmax.f32 %v41, %v50
  %52 = vst.msk [vmem:[#allocation3] sm:$0xff] %vm18, %v51
  %v53 = vld [vmem:[#allocation2] sm:$0xff]
  %v54 = vld [vmem:[#allocation3] sm:$0xff]
  %v55 = vsub.f32 %v54, %v53
  %v56 = vrcp.pop %v55
  %v57 = vmul.f32 1.0, %v56
  %58 = vst [vmem:[#allocation4] sm:$0xff] 0.0
  %v59 = vld [vmem:[%s1] sm:$0xff]
  %v60 = vld [vmem:[%s1 + $0x8] sm:$0xff]
  %v61 = vld [vmem:[%s1 + $0x10] sm:$0xff]
  %v62 = vld [vmem:[%s1 + $0x18] sm:$0xff]
  %v63 = vld [vmem:[%s1 + $0x20] sm:$0xff]
  %v64 = vld [vmem:[%s1 + $0x28] sm:$0xff]
  %v65 = vld [vmem:[%s1 + $0x30] sm:$0xff]
  %v66 = vld [vmem:[%s1 + $0x38] sm:$0xff]
  %v67 = vld [vmem:[%s2] sm:$0xff]
  %v68 = vld [vmem:[%s2 + $0x8] sm:$0xff]
  %v69 = vld [vmem:[%s2 + $0x10] sm:$0xff]
  %v70 = vld [vmem:[%s2 + $0x18] sm:$0xff]
  %v71 = vld [vmem:[%s2 + $0x20] sm:$0xff]
  %v72 = vld [vmem:[%s2 + $0x28] sm:$0xff]
  %v73 = vld [vmem:[%s2 + $0x30] sm:$0xff]
  %v74 = vld [vmem:[%s2 + $0x38] sm:$0xff]
  %76 = vset.pattern.permute.xlu0 0
  %77 = vperm.xlu0 %76, %v53
  %v78 = vpop.permute.xlu0 %77
  %v80 = vsub.f32 %v59, %v78
  %v81 = vsub.f32 %v60, %v78
  %v82 = vsub.f32 %v61, %v78
  %v83 = vsub.f32 %v62, %v78
  %v84 = vsub.f32 %v63, %v78
  %v85 = vsub.f32 %v64, %v78
  %v86 = vsub.f32 %v65, %v78
  %v87 = vsub.f32 %v66, %v78
  %89 = vset.pattern.permute.xlu0 0
  %90 = vperm.xlu0 %89, %v57
  %v91 = vpop.permute.xlu0 %90
  %v93 = vmul.f32 %v80, %v91
  %v94 = vmul.f32 %v81, %v91
  %v95 = vmul.f32 %v82, %v91
  %v96 = vmul.f32 %v83, %v91
  %v97 = vmul.f32 %v84, %v91
  %v98 = vmul.f32 %v85, %v91
  %v99 = vmul.f32 %v86, %v91
  %v100 = vmul.f32 %v87, %v91
  %v101 = vsub.f32 1.0, %v93
  %v102 = vsub.f32 1.0, %v94
  %v103 = vsub.f32 1.0, %v95
  %v104 = vsub.f32 1.0, %v96
  %v105 = vsub.f32 1.0, %v97
  %v106 = vsub.f32 1.0, %v98
  %v107 = vsub.f32 1.0, %v99
  %v108 = vsub.f32 1.0, %v100
  %v109 = vmul.f32 %v67, %v101
  %v110 = vmul.f32 %v68, %v102
  %v111 = vmul.f32 %v69, %v103
  %v112 = vmul.f32 %v70, %v104
  %v113 = vmul.f32 %v71, %v105
  %v114 = vmul.f32 %v72, %v106
  %v115 = vmul.f32 %v73, %v107
  %v116 = vmul.f32 %v74, %v108
  %v117 = vld [vmem:[#allocation4] sm:$0xff]
  %v118 = vpack.c.bf16 %v109, %v109
  %v119 = vpack.c.bf16 %v110, %v110
  %v120 = vpack.c.bf16 %v111, %v111
  %v121 = vpack.c.bf16 %v112, %v112
  %v122 = vpack.c.bf16 %v113, %v113
  %v123 = vpack.c.bf16 %v114, %v114
  %v124 = vpack.c.bf16 %v115, %v115
  %v125 = vpack.c.bf16 %v116, %v116
  %v126 = vld [vmem:[%s3] sm:$0xf]
  %v127 = vld [vmem:[%s3 + $0x4] sm:$0xf]
  %v128 = vld [vmem:[%s3 + $0x8] sm:$0xf]
  %v129 = vld [vmem:[%s3 + $0xc] sm:$0xf]
  %v130 = vld [vmem:[%s3 + $0x10] sm:$0xf]
  %v131 = vld [vmem:[%s3 + $0x14] sm:$0xf]
  %v132 = vld [vmem:[%s3 + $0x18] sm:$0xf]
  %v133 = vld [vmem:[%s3 + $0x1c] sm:$0xf]
  %v134 = vld [vmem:[%s3 + $0x20] sm:$0xf]
  %v135 = vld [vmem:[%s3 + $0x24] sm:$0xf]
  %v136 = vld [vmem:[%s3 + $0x28] sm:$0xf]
  %v137 = vld [vmem:[%s3 + $0x2c] sm:$0xf]
  %v138 = vld [vmem:[%s3 + $0x30] sm:$0xf]
  %v139 = vld [vmem:[%s3 + $0x34] sm:$0xf]
  %v140 = vld [vmem:[%s3 + $0x38] sm:$0xf]
  %v141 = vld [vmem:[%s3 + $0x3c] sm:$0xf]
  %v142 = vld [vmem:[%s3 + $0x40] sm:$0xf]
  %v143 = vld [vmem:[%s3 + $0x44] sm:$0xf]
  %v144 = vld [vmem:[%s3 + $0x48] sm:$0xf]
  %v145 = vld [vmem:[%s3 + $0x4c] sm:$0xf]
  %v146 = vld [vmem:[%s3 + $0x50] sm:$0xf]
  %v147 = vld [vmem:[%s3 + $0x54] sm:$0xf]
  %v148 = vld [vmem:[%s3 + $0x58] sm:$0xf]
  %v149 = vld [vmem:[%s3 + $0x5c] sm:$0xf]
  %v150 = vld [vmem:[%s3 + $0x60] sm:$0xf]
  %v151 = vld [vmem:[%s3 + $0x64] sm:$0xf]
  %v152 = vld [vmem:[%s3 + $0x68] sm:$0xf]
  %v153 = vld [vmem:[%s3 + $0x6c] sm:$0xf]
  %v154 = vld [vmem:[%s3 + $0x70] sm:$0xf]
  %v155 = vld [vmem:[%s3 + $0x74] sm:$0xf]
  %v156 = vld [vmem:[%s3 + $0x78] sm:$0xf]
  %v157 = vld [vmem:[%s3 + $0x7c] sm:$0xf]
  %v158 = vld [vmem:[%s3 + $0x80] sm:$0xf]
  %v159 = vld [vmem:[%s3 + $0x84] sm:$0xf]
  %v160 = vld [vmem:[%s3 + $0x88] sm:$0xf]
  %v161 = vld [vmem:[%s3 + $0x8c] sm:$0xf]
  %v162 = vld [vmem:[%s3 + $0x90] sm:$0xf]
  %v163 = vld [vmem:[%s3 + $0x94] sm:$0xf]
  %v164 = vld [vmem:[%s3 + $0x98] sm:$0xf]
  %v165 = vld [vmem:[%s3 + $0x9c] sm:$0xf]
  %v166 = vld [vmem:[%s3 + $0xa0] sm:$0xf]
  %v167 = vld [vmem:[%s3 + $0xa4] sm:$0xf]
  %v168 = vld [vmem:[%s3 + $0xa8] sm:$0xf]
  %v169 = vld [vmem:[%s3 + $0xac] sm:$0xf]
  %v170 = vld [vmem:[%s3 + $0xb0] sm:$0xf]
  %v171 = vld [vmem:[%s3 + $0xb4] sm:$0xf]
  %v172 = vld [vmem:[%s3 + $0xb8] sm:$0xf]
  %v173 = vld [vmem:[%s3 + $0xbc] sm:$0xf]
  %v174 = vld [vmem:[%s3 + $0xc0] sm:$0xf]
  %v175 = vld [vmem:[%s3 + $0xc4] sm:$0xf]
  %v176 = vld [vmem:[%s3 + $0xc8] sm:$0xf]
  %v177 = vld [vmem:[%s3 + $0xcc] sm:$0xf]
  %v178 = vld [vmem:[%s3 + $0xd0] sm:$0xf]
  %v179 = vld [vmem:[%s3 + $0xd4] sm:$0xf]
  %v180 = vld [vmem:[%s3 + $0xd8] sm:$0xf]
  %v181 = vld [vmem:[%s3 + $0xdc] sm:$0xf]
  %v182 = vld [vmem:[%s3 + $0xe0] sm:$0xf]
  %v183 = vld [vmem:[%s3 + $0xe4] sm:$0xf]
  %v184 = vld [vmem:[%s3 + $0xe8] sm:$0xf]
  %v185 = vld [vmem:[%s3 + $0xec] sm:$0xf]
  %v186 = vld [vmem:[%s3 + $0xf0] sm:$0xf]
  %v187 = vld [vmem:[%s3 + $0xf4] sm:$0xf]
  %v188 = vld [vmem:[%s3 + $0xf8] sm:$0xf]
  %v189 = vld [vmem:[%s3 + $0xfc] sm:$0xf]
  %v190 = vld [vmem:[%s3 + $0x100] sm:$0xf]
  %v191 = vld [vmem:[%s3 + $0x104] sm:$0xf]
  %v192 = vld [vmem:[%s3 + $0x108] sm:$0xf]
  %v193 = vld [vmem:[%s3 + $0x10c] sm:$0xf]
  %v194 = vld [vmem:[%s3 + $0x110] sm:$0xf]
  %v195 = vld [vmem:[%s3 + $0x114] sm:$0xf]
  %v196 = vld [vmem:[%s3 + $0x118] sm:$0xf]
  %v197 = vld [vmem:[%s3 + $0x11c] sm:$0xf]
  %v198 = vld [vmem:[%s3 + $0x120] sm:$0xf]
  %v199 = vld [vmem:[%s3 + $0x124] sm:$0xf]
  %v200 = vld [vmem:[%s3 + $0x128] sm:$0xf]
  %v201 = vld [vmem:[%s3 + $0x12c] sm:$0xf]
  %v202 = vld [vmem:[%s3 + $0x130] sm:$0xf]
  %v203 = vld [vmem:[%s3 + $0x134] sm:$0xf]
  %v204 = vld [vmem:[%s3 + $0x138] sm:$0xf]
  %v205 = vld [vmem:[%s3 + $0x13c] sm:$0xf]
  %v206 = vld [vmem:[%s3 + $0x140] sm:$0xf]
  %v207 = vld [vmem:[%s3 + $0x144] sm:$0xf]
  %v208 = vld [vmem:[%s3 + $0x148] sm:$0xf]
  %v209 = vld [vmem:[%s3 + $0x14c] sm:$0xf]
  %v210 = vld [vmem:[%s3 + $0x150] sm:$0xf]
  %v211 = vld [vmem:[%s3 + $0x154] sm:$0xf]
  %v212 = vld [vmem:[%s3 + $0x158] sm:$0xf]
  %v213 = vld [vmem:[%s3 + $0x15c] sm:$0xf]
  %v214 = vld [vmem:[%s3 + $0x160] sm:$0xf]
  %v215 = vld [vmem:[%s3 + $0x164] sm:$0xf]
  %v216 = vld [vmem:[%s3 + $0x168] sm:$0xf]
  %v217 = vld [vmem:[%s3 + $0x16c] sm:$0xf]
  %v218 = vld [vmem:[%s3 + $0x170] sm:$0xf]
  %v219 = vld [vmem:[%s3 + $0x174] sm:$0xf]
  %v220 = vld [vmem:[%s3 + $0x178] sm:$0xf]
  %v221 = vld [vmem:[%s3 + $0x17c] sm:$0xf]
  %v222 = vld [vmem:[%s3 + $0x180] sm:$0xf]
  %v223 = vld [vmem:[%s3 + $0x184] sm:$0xf]
  %v224 = vld [vmem:[%s3 + $0x188] sm:$0xf]
  %v225 = vld [vmem:[%s3 + $0x18c] sm:$0xf]
  %v226 = vld [vmem:[%s3 + $0x190] sm:$0xf]
  %v227 = vld [vmem:[%s3 + $0x194] sm:$0xf]
  %v228 = vld [vmem:[%s3 + $0x198] sm:$0xf]
  %v229 = vld [vmem:[%s3 + $0x19c] sm:$0xf]
  %v230 = vld [vmem:[%s3 + $0x1a0] sm:$0xf]
  %v231 = vld [vmem:[%s3 + $0x1a4] sm:$0xf]
  %v232 = vld [vmem:[%s3 + $0x1a8] sm:$0xf]
  %v233 = vld [vmem:[%s3 + $0x1ac] sm:$0xf]
  %v234 = vld [vmem:[%s3 + $0x1b0] sm:$0xf]
  %v235 = vld [vmem:[%s3 + $0x1b4] sm:$0xf]
  %v236 = vld [vmem:[%s3 + $0x1b8] sm:$0xf]
  %v237 = vld [vmem:[%s3 + $0x1bc] sm:$0xf]
  %v238 = vld [vmem:[%s3 + $0x1c0] sm:$0xf]
  %v239 = vld [vmem:[%s3 + $0x1c4] sm:$0xf]
  %v240 = vld [vmem:[%s3 + $0x1c8] sm:$0xf]
  %v241 = vld [vmem:[%s3 + $0x1cc] sm:$0xf]
  %v242 = vld [vmem:[%s3 + $0x1d0] sm:$0xf]
  %v243 = vld [vmem:[%s3 + $0x1d4] sm:$0xf]
  %v244 = vld [vmem:[%s3 + $0x1d8] sm:$0xf]
  %v245 = vld [vmem:[%s3 + $0x1dc] sm:$0xf]
  %v246 = vld [vmem:[%s3 + $0x1e0] sm:$0xf]
  %v247 = vld [vmem:[%s3 + $0x1e4] sm:$0xf]
  %v248 = vld [vmem:[%s3 + $0x1e8] sm:$0xf]
  %v249 = vld [vmem:[%s3 + $0x1ec] sm:$0xf]
  %v250 = vld [vmem:[%s3 + $0x1f0] sm:$0xf]
  %v251 = vld [vmem:[%s3 + $0x1f4] sm:$0xf]
  %v252 = vld [vmem:[%s3 + $0x1f8] sm:$0xf]
  %v253 = vld [vmem:[%s3 + $0x1fc] sm:$0xf]
  %v382 = vunpack.c.l.b16 %v126
  %v383 = vunpack.c.l.b16 %v127
  %v384 = vunpack.c.l.b16 %v128
  %v385 = vunpack.c.l.b16 %v129
  %v386 = vunpack.c.l.b16 %v130
  %v387 = vunpack.c.l.b16 %v131
  %v388 = vunpack.c.l.b16 %v132
  %v389 = vunpack.c.l.b16 %v133
  %v390 = vunpack.c.l.b16 %v134
  %v391 = vunpack.c.l.b16 %v135
  %v392 = vunpack.c.l.b16 %v136
  %v393 = vunpack.c.l.b16 %v137
  %v394 = vunpack.c.l.b16 %v138
  %v395 = vunpack.c.l.b16 %v139
  %v396 = vunpack.c.l.b16 %v140
  %v397 = vunpack.c.l.b16 %v141
  %v398 = vunpack.c.l.b16 %v142
  %v399 = vunpack.c.l.b16 %v143
  %v400 = vunpack.c.l.b16 %v144
  %v401 = vunpack.c.l.b16 %v145
  %v402 = vunpack.c.l.b16 %v146
  %v403 = vunpack.c.l.b16 %v147
  %v404 = vunpack.c.l.b16 %v148
  %v405 = vunpack.c.l.b16 %v149
  %v406 = vunpack.c.l.b16 %v150
  %v407 = vunpack.c.l.b16 %v151
  %v408 = vunpack.c.l.b16 %v152
  %v409 = vunpack.c.l.b16 %v153
  %v410 = vunpack.c.l.b16 %v154
  %v411 = vunpack.c.l.b16 %v155
  %v412 = vunpack.c.l.b16 %v156
  %v413 = vunpack.c.l.b16 %v157
  %v414 = vunpack.c.l.b16 %v158
  %v415 = vunpack.c.l.b16 %v159
  %v416 = vunpack.c.l.b16 %v160
  %v417 = vunpack.c.l.b16 %v161
  %v418 = vunpack.c.l.b16 %v162
  %v419 = vunpack.c.l.b16 %v163
  %v420 = vunpack.c.l.b16 %v164
  %v421 = vunpack.c.l.b16 %v165
  %v422 = vunpack.c.l.b16 %v166
  %v423 = vunpack.c.l.b16 %v167
  %v424 = vunpack.c.l.b16 %v168
  %v425 = vunpack.c.l.b16 %v169
  %v426 = vunpack.c.l.b16 %v170
  %v427 = vunpack.c.l.b16 %v171
  %v428 = vunpack.c.l.b16 %v172
  %v429 = vunpack.c.l.b16 %v173
  %v430 = vunpack.c.l.b16 %v174
  %v431 = vunpack.c.l.b16 %v175
  %v432 = vunpack.c.l.b16 %v176
  %v433 = vunpack.c.l.b16 %v177
  %v434 = vunpack.c.l.b16 %v178
  %v435 = vunpack.c.l.b16 %v179
  %v436 = vunpack.c.l.b16 %v180
  %v437 = vunpack.c.l.b16 %v181
  %v438 = vunpack.c.l.b16 %v182
  %v439 = vunpack.c.l.b16 %v183
  %v440 = vunpack.c.l.b16 %v184
  %v441 = vunpack.c.l.b16 %v185
  %v442 = vunpack.c.l.b16 %v186
  %v443 = vunpack.c.l.b16 %v187
  %v444 = vunpack.c.l.b16 %v188
  %v445 = vunpack.c.l.b16 %v189
  %v446 = vunpack.c.l.b16 %v190
  %v447 = vunpack.c.l.b16 %v191
  %v448 = vunpack.c.l.b16 %v192
  %v449 = vunpack.c.l.b16 %v193
  %v450 = vunpack.c.l.b16 %v194
  %v451 = vunpack.c.l.b16 %v195
  %v452 = vunpack.c.l.b16 %v196
  %v453 = vunpack.c.l.b16 %v197
  %v454 = vunpack.c.l.b16 %v198
  %v455 = vunpack.c.l.b16 %v199
  %v456 = vunpack.c.l.b16 %v200
  %v457 = vunpack.c.l.b16 %v201
  %v458 = vunpack.c.l.b16 %v202
  %v459 = vunpack.c.l.b16 %v203
  %v460 = vunpack.c.l.b16 %v204
  %v461 = vunpack.c.l.b16 %v205
  %v462 = vunpack.c.l.b16 %v206
  %v463 = vunpack.c.l.b16 %v207
  %v464 = vunpack.c.l.b16 %v208
  %v465 = vunpack.c.l.b16 %v209
  %v466 = vunpack.c.l.b16 %v210
  %v467 = vunpack.c.l.b16 %v211
  %v468 = vunpack.c.l.b16 %v212
  %v469 = vunpack.c.l.b16 %v213
  %v470 = vunpack.c.l.b16 %v214
  %v471 = vunpack.c.l.b16 %v215
  %v472 = vunpack.c.l.b16 %v216
  %v473 = vunpack.c.l.b16 %v217
  %v474 = vunpack.c.l.b16 %v218
  %v475 = vunpack.c.l.b16 %v219
  %v476 = vunpack.c.l.b16 %v220
  %v477 = vunpack.c.l.b16 %v221
  %v478 = vunpack.c.l.b16 %v222
  %v479 = vunpack.c.l.b16 %v223
  %v480 = vunpack.c.l.b16 %v224
  %v481 = vunpack.c.l.b16 %v225
  %v482 = vunpack.c.l.b16 %v226
  %v483 = vunpack.c.l.b16 %v227
  %v484 = vunpack.c.l.b16 %v228
  %v485 = vunpack.c.l.b16 %v229
  %v486 = vunpack.c.l.b16 %v230
  %v487 = vunpack.c.l.b16 %v231
  %v488 = vunpack.c.l.b16 %v232
  %v489 = vunpack.c.l.b16 %v233
  %v490 = vunpack.c.l.b16 %v234
  %v491 = vunpack.c.l.b16 %v235
  %v492 = vunpack.c.l.b16 %v236
  %v493 = vunpack.c.l.b16 %v237
  %v494 = vunpack.c.l.b16 %v238
  %v495 = vunpack.c.l.b16 %v239
  %v496 = vunpack.c.l.b16 %v240
  %v497 = vunpack.c.l.b16 %v241
  %v498 = vunpack.c.l.b16 %v242
  %v499 = vunpack.c.l.b16 %v243
  %v500 = vunpack.c.l.b16 %v244
  %v501 = vunpack.c.l.b16 %v245
  %v502 = vunpack.c.l.b16 %v246
  %v503 = vunpack.c.l.b16 %v247
  %v504 = vunpack.c.l.b16 %v248
  %v505 = vunpack.c.l.b16 %v249
  %v506 = vunpack.c.l.b16 %v250
  %v507 = vunpack.c.l.b16 %v251
  %v508 = vunpack.c.l.b16 %v252
  %v509 = vunpack.c.l.b16 %v253
  %v510 = vpack.c.b16 %v383, %v382
  %v511 = vpack.c.b16 %v385, %v384
  %v512 = vpack.c.b16 %v387, %v386
  %v513 = vpack.c.b16 %v389, %v388
  %v514 = vpack.c.b16 %v391, %v390
  %v515 = vpack.c.b16 %v393, %v392
  %v516 = vpack.c.b16 %v395, %v394
  %v517 = vpack.c.b16 %v397, %v396
  %v518 = vpack.c.b16 %v399, %v398
  %v519 = vpack.c.b16 %v401, %v400
  %v520 = vpack.c.b16 %v403, %v402
  %v521 = vpack.c.b16 %v405, %v404
  %v522 = vpack.c.b16 %v407, %v406
  %v523 = vpack.c.b16 %v409, %v408
  %v524 = vpack.c.b16 %v411, %v410
  %v525 = vpack.c.b16 %v413, %v412
  %v526 = vpack.c.b16 %v415, %v414
  %v527 = vpack.c.b16 %v417, %v416
  %v528 = vpack.c.b16 %v419, %v418
  %v529 = vpack.c.b16 %v421, %v420
  %v530 = vpack.c.b16 %v423, %v422
  %v531 = vpack.c.b16 %v425, %v424
  %v532 = vpack.c.b16 %v427, %v426
  %v533 = vpack.c.b16 %v429, %v428
  %v534 = vpack.c.b16 %v431, %v430
  %v535 = vpack.c.b16 %v433, %v432
  %v536 = vpack.c.b16 %v435, %v434
  %v537 = vpack.c.b16 %v437, %v436
  %v538 = vpack.c.b16 %v439, %v438
  %v539 = vpack.c.b16 %v441, %v440
  %v540 = vpack.c.b16 %v443, %v442
  %v541 = vpack.c.b16 %v445, %v444
  %v542 = vpack.c.b16 %v447, %v446
  %v543 = vpack.c.b16 %v449, %v448
  %v544 = vpack.c.b16 %v451, %v450
  %v545 = vpack.c.b16 %v453, %v452
  %v546 = vpack.c.b16 %v455, %v454
  %v547 = vpack.c.b16 %v457, %v456
  %v548 = vpack.c.b16 %v459, %v458
  %v549 = vpack.c.b16 %v461, %v460
  %v550 = vpack.c.b16 %v463, %v462
  %v551 = vpack.c.b16 %v465, %v464
  %v552 = vpack.c.b16 %v467, %v466
  %v553 = vpack.c.b16 %v469, %v468
  %v554 = vpack.c.b16 %v471, %v470
  %v555 = vpack.c.b16 %v473, %v472
  %v556 = vpack.c.b16 %v475, %v474
  %v557 = vpack.c.b16 %v477, %v476
  %v558 = vpack.c.b16 %v479, %v478
  %v559 = vpack.c.b16 %v481, %v480
  %v560 = vpack.c.b16 %v483, %v482
  %v561 = vpack.c.b16 %v485, %v484
  %v562 = vpack.c.b16 %v487, %v486
  %v563 = vpack.c.b16 %v489, %v488
  %v564 = vpack.c.b16 %v491, %v490
  %v565 = vpack.c.b16 %v493, %v492
  %v566 = vpack.c.b16 %v495, %v494
  %v567 = vpack.c.b16 %v497, %v496
  %v568 = vpack.c.b16 %v499, %v498
  %v569 = vpack.c.b16 %v501, %v500
  %v570 = vpack.c.b16 %v503, %v502
  %v571 = vpack.c.b16 %v505, %v504
  %v572 = vpack.c.b16 %v507, %v506
  %v573 = vpack.c.b16 %v509, %v508
  %638 = vmatprep.subr.bf16.mxu0 0
  %639 = vmatpush1.bf16.msra.mxu0 %v517
  %640 = vmatprep.subr.bf16.mxu0 0
  %641 = vmatpush1.bf16.msra.mxu0 %v516
  %642 = vmatprep.subr.bf16.mxu0 0
  %643 = vmatpush1.bf16.msra.mxu0 %v515
  %644 = vmatprep.subr.bf16.mxu0 0
  %645 = vmatpush1.bf16.msra.mxu0 %v514
  %646 = vmatprep.subr.bf16.mxu0 0
  %647 = vmatpush1.bf16.msra.mxu0 %v513
  %648 = vmatprep.subr.bf16.mxu0 0
  %649 = vmatpush1.bf16.msra.mxu0 %v512
  %650 = vmatprep.subr.bf16.mxu0 0
  %651 = vmatpush1.bf16.msra.mxu0 %v511
  %652 = vmatprep.subr.bf16.mxu0 0
  %653 = vmatpush1.bf16.msra.mxu0 %v510
  %654 = vmatprep.subr.bf16.mxu0 0
  %655 = vmatpush2.bf16.msra.mxu0 %v525
  %656 = vmatprep.subr.bf16.mxu0 0
  %657 = vmatpush2.bf16.msra.mxu0 %v524
  %658 = vmatprep.subr.bf16.mxu0 0
  %659 = vmatpush2.bf16.msra.mxu0 %v523
  %660 = vmatprep.subr.bf16.mxu0 0
  %661 = vmatpush2.bf16.msra.mxu0 %v522
  %662 = vmatprep.subr.bf16.mxu0 0
  %663 = vmatpush2.bf16.msra.mxu0 %v521
  %664 = vmatprep.subr.bf16.mxu0 0
  %665 = vmatpush2.bf16.msra.mxu0 %v520
  %666 = vmatprep.subr.bf16.mxu0 0
  %667 = vmatpush2.bf16.msra.mxu0 %v519
  %668 = vmatprep.subr.bf16.mxu0 0
  %669 = vmatpush2.bf16.msra.mxu0 %v518
  %670 = vmatprep.mubr.bf16.mxu0 %v119
  %671 = vmatmul.mubr.bf16.gmra.mxu0 %v118
  %v672 = vpop.f32.mrf.mxu0
  %v673 = vadd.f32 0.0, %v672
  %v674 = vpop.f32.mrf.mxu0
  %v675 = vpop.f32.mrf.mxu0
  %v676 = vpop.f32.mrf.mxu0
  %677 = vdwg.mxu0
  %678 = vmatprep.subr.bf16.mxu0 0
  %679 = vmatpush1.bf16.msra.mxu0 %v533
  %680 = vmatprep.subr.bf16.mxu0 0
  %681 = vmatpush1.bf16.msra.mxu0 %v532
  %682 = vmatprep.subr.bf16.mxu0 0
  %683 = vmatpush1.bf16.msra.mxu0 %v531
  %684 = vmatprep.subr.bf16.mxu0 0
  %685 = vmatpush1.bf16.msra.mxu0 %v530
  %686 = vmatprep.subr.bf16.mxu0 0
  %687 = vmatpush1.bf16.msra.mxu0 %v529
  %688 = vmatprep.subr.bf16.mxu0 0
  %689 = vmatpush1.bf16.msra.mxu0 %v528
  %690 = vmatprep.subr.bf16.mxu0 0
  %691 = vmatpush1.bf16.msra.mxu0 %v527
  %692 = vmatprep.subr.bf16.mxu0 0
  %693 = vmatpush1.bf16.msra.mxu0 %v526
  %694 = vmatprep.subr.bf16.mxu0 0
  %695 = vmatpush2.bf16.msra.mxu0 %v541
  %696 = vmatprep.subr.bf16.mxu0 0
  %697 = vmatpush2.bf16.msra.mxu0 %v540
  %698 = vmatprep.subr.bf16.mxu0 0
  %699 = vmatpush2.bf16.msra.mxu0 %v539
  %700 = vmatprep.subr.bf16.mxu0 0
  %701 = vmatpush2.bf16.msra.mxu0 %v538
  %702 = vmatprep.subr.bf16.mxu0 0
  %703 = vmatpush2.bf16.msra.mxu0 %v537
  %704 = vmatprep.subr.bf16.mxu0 0
  %705 = vmatpush2.bf16.msra.mxu0 %v536
  %706 = vmatprep.subr.bf16.mxu0 0
  %707 = vmatpush2.bf16.msra.mxu0 %v535
  %708 = vmatprep.subr.bf16.mxu0 0
  %709 = vmatpush2.bf16.msra.mxu0 %v534
  %710 = vmatprep.mubr.bf16.mxu0 %v121
  %711 = vmatmul.mubr.bf16.gmra.mxu0 %v120
  %v712 = vpop.f32.mrf.mxu0
  %v713 = vadd.f32 %v673, %v712
  %v714 = vpop.f32.mrf.mxu0
  %v715 = vpop.f32.mrf.mxu0
  %v716 = vpop.f32.mrf.mxu0
  %717 = vdwg.mxu0
  %718 = vmatprep.subr.bf16.mxu0 0
  %719 = vmatpush1.bf16.msra.mxu0 %v549
  %720 = vmatprep.subr.bf16.mxu0 0
  %721 = vmatpush1.bf16.msra.mxu0 %v548
  %722 = vmatprep.subr.bf16.mxu0 0
  %723 = vmatpush1.bf16.msra.mxu0 %v547
  %724 = vmatprep.subr.bf16.mxu0 0
  %725 = vmatpush1.bf16.msra.mxu0 %v546
  %726 = vmatprep.subr.bf16.mxu0 0
  %727 = vmatpush1.bf16.msra.mxu0 %v545
  %728 = vmatprep.subr.bf16.mxu0 0
  %729 = vmatpush1.bf16.msra.mxu0 %v544
  %730 = vmatprep.subr.bf16.mxu0 0
  %731 = vmatpush1.bf16.msra.mxu0 %v543
  %732 = vmatprep.subr.bf16.mxu0 0
  %733 = vmatpush1.bf16.msra.mxu0 %v542
  %734 = vmatprep.subr.bf16.mxu0 0
  %735 = vmatpush2.bf16.msra.mxu0 %v557
  %736 = vmatprep.subr.bf16.mxu0 0
  %737 = vmatpush2.bf16.msra.mxu0 %v556
  %738 = vmatprep.subr.bf16.mxu0 0
  %739 = vmatpush2.bf16.msra.mxu0 %v555
  %740 = vmatprep.subr.bf16.mxu0 0
  %741 = vmatpush2.bf16.msra.mxu0 %v554
  %742 = vmatprep.subr.bf16.mxu0 0
  %743 = vmatpush2.bf16.msra.mxu0 %v553
  %744 = vmatprep.subr.bf16.mxu0 0
  %745 = vmatpush2.bf16.msra.mxu0 %v552
  %746 = vmatprep.subr.bf16.mxu0 0
  %747 = vmatpush2.bf16.msra.mxu0 %v551
  %748 = vmatprep.subr.bf16.mxu0 0
  %749 = vmatpush2.bf16.msra.mxu0 %v550
  %750 = vmatprep.mubr.bf16.mxu0 %v123
  %751 = vmatmul.mubr.bf16.gmra.mxu0 %v122
  %v752 = vpop.f32.mrf.mxu0
  %v753 = vadd.f32 %v713, %v752
  %v754 = vpop.f32.mrf.mxu0
  %v755 = vpop.f32.mrf.mxu0
  %v756 = vpop.f32.mrf.mxu0
  %757 = vdwg.mxu0
  %758 = vmatprep.subr.bf16.mxu0 0
  %759 = vmatpush1.bf16.msra.mxu0 %v565
  %760 = vmatprep.subr.bf16.mxu0 0
  %761 = vmatpush1.bf16.msra.mxu0 %v564
  %762 = vmatprep.subr.bf16.mxu0 0
  %763 = vmatpush1.bf16.msra.mxu0 %v563
  %764 = vmatprep.subr.bf16.mxu0 0
  %765 = vmatpush1.bf16.msra.mxu0 %v562
  %766 = vmatprep.subr.bf16.mxu0 0
  %767 = vmatpush1.bf16.msra.mxu0 %v561
  %768 = vmatprep.subr.bf16.mxu0 0
  %769 = vmatpush1.bf16.msra.mxu0 %v560
  %770 = vmatprep.subr.bf16.mxu0 0
  %771 = vmatpush1.bf16.msra.mxu0 %v559
  %772 = vmatprep.subr.bf16.mxu0 0
  %773 = vmatpush1.bf16.msra.mxu0 %v558
  %774 = vmatprep.subr.bf16.mxu0 0
  %775 = vmatpush2.bf16.msra.mxu0 %v573
  %776 = vmatprep.subr.bf16.mxu0 0
  %777 = vmatpush2.bf16.msra.mxu0 %v572
  %778 = vmatprep.subr.bf16.mxu0 0
  %779 = vmatpush2.bf16.msra.mxu0 %v571
  %780 = vmatprep.subr.bf16.mxu0 0
  %781 = vmatpush2.bf16.msra.mxu0 %v570
  %782 = vmatprep.subr.bf16.mxu0 0
  %783 = vmatpush2.bf16.msra.mxu0 %v569
  %784 = vmatprep.subr.bf16.mxu0 0
  %785 = vmatpush2.bf16.msra.mxu0 %v568
  %786 = vmatprep.subr.bf16.mxu0 0
  %787 = vmatpush2.bf16.msra.mxu0 %v567
  %788 = vmatprep.subr.bf16.mxu0 0
  %789 = vmatpush2.bf16.msra.mxu0 %v566
  %790 = vmatprep.mubr.bf16.mxu0 %v125
  %791 = vmatmul.mubr.bf16.gmra.mxu0 %v124
  %v792 = vpop.f32.mrf.mxu0
  %v793 = vadd.f32 %v753, %v792
  %v794 = vpop.f32.mrf.mxu0
  %v795 = vpop.f32.mrf.mxu0
  %v796 = vpop.f32.mrf.mxu0
  %797 = vdwg.mxu0
  %v798 = vadd.f32 %v117, %v793
  %799 = vst [vmem:[#allocation4] sm:$0xff] %v798
  %v800 = vld [vmem:[#allocation4] sm:$0xff]
  %v801 = vld [vmem:[%s0] sm:$0xff]
  %v802 = vmul.f32 %v801, %v800
  %803 = vadd.xlane.f32.xlu0 %v802
  %v804 = vpop.xlane.xlu0 %803
  %v805 = vmul.f32 %v801, %v801
  %806 = vadd.xlane.f32.xlu0 %v805
  %v807 = vpop.xlane.xlu0 %806
  %v808 = vrsqrt.pop %v807
  %v809 = vmul.f32 %v807, %v808
  %vm810 = vcmp.eq.f32.partialorder %v807, inf
  %v811 = vsel %vm810, %v807, %v809
  %vm812 = vcmp.eq.f32.partialorder %v807, 0.0
  %v813 = vand.u32 %v807, 2147483648
  %v814 = vsel %vm812, %v813, %v811
  %v815 = vmax.f32 %v814, 1e-08
  %v816 = vmul.f32 %v800, %v800
  %817 = vadd.xlane.f32.xlu0 %v816
  %v818 = vpop.xlane.xlu0 %817
  %v819 = vrsqrt.pop %v818
  %v820 = vmul.f32 %v818, %v819
  %vm821 = vcmp.eq.f32.partialorder %v818, inf
  %v822 = vsel %vm821, %v818, %v820
  %vm823 = vcmp.eq.f32.partialorder %v818, 0.0
  %v824 = vand.u32 %v818, 2147483648
  %v825 = vsel %vm823, %v824, %v822
  %v826 = vmax.f32 %v825, 1e-08
  %v827 = vmul.f32 %v815, %v826
  %v828 = vrcp.pop %v827
  %v829 = vmul.f32 %v804, %v828
  %v830 = vand.u32 2147483647, %v829
  %s831 = smul.u32 0, 8
  %v832 = vlaneseq
  %v833 = vshrl.u32 %v832, 7
  %v834 = vstv %s831
  %v835 = vadd.s32 %v834, %v833
  %vm836 = vcmp.lt.s32.totalorder %v835, 2
  %v837 = vsel %vm836, %v830, 0.0
  %v838 = vsel %vm18, %v837, 0.0
  %839 = vadd.xlane.f32.xlu0 %v838
  %v840 = vpop.xlane.xlu0 %839
  %v841 = vrot.slane %v840, 4
  %v842 = vadd.f32 %v840, %v841
  %v843 = vrot.slane %v842, 2
  %v844 = vadd.f32 %v842, %v843
  %v845 = vrot.slane %v844, 1
  %v846 = vadd.f32 %v844, %v845
  %s847 = vtos %v846
  %v848 = vstv %s847
  %849 = vst [vmem:[%s4] sm:$0xff] %v848
  // Predicated region
  $region18: #{fid_loss.1} parent=0 // pred_check
    _
  $region19: #{fid_loss.1} parent=0 // pred_check_branch
    %851 = sbr.rel (0) target = $region21
  $region20: #{fid_loss.1} parent=0 // pred_region
    _
  $region21: #{fid_loss.1} parent=0 // pred_fallthru
    _
  // Predicated region
  $region22: #{fid_loss.1} parent=0 // pred_check
    _
  $region23: #{fid_loss.1} parent=0 // pred_check_branch
    %853 = sbr.rel (0) target = $region25
  $region24: #{fid_loss.1} parent=0 // pred_region
    _
  $region25: #{fid_loss.1} parent=0 // pred_fallthru
    _

</llo_original>
